<compile_context>
chip_gen: v5e
topology: v5e:2x2
jax: 0.10.0
libtpu: 0.0.40
codegen_flags: <defaults>
</compile_context>

<pallas_src>
import jax
import jax.numpy as jnp
from jax.experimental import pallas as pl
from jax.experimental.pallas import tpu as pltpu


_VMEM_LIMIT = 48 * 1024 * 1024    # < v7x's 64 MiB physical VMEM; ample on v5e/v6e
_VMEM_BUDGET = 40 * 1024 * 1024   # target working set when auto-choosing tiles


# --------------------------------------------------------------------------
# kernels
# --------------------------------------------------------------------------

def _proj_kernel(x_ref, w1t_ref, h1_ref):
    # x_ref: (1, tk, D); w1t_ref: (D, D); h1_ref: (1, tk, D).  h1 = x @ W1.T
    h1_ref[0] = jnp.dot(x_ref[0], w1t_ref[...],
                        preferred_element_type=jnp.float32).astype(h1_ref.dtype)


def _mix_heads(m2_ref, h1_blk, d):
    """Per-head (tq, tk) x (tk, d) MXU matmuls, heads concatenated along lanes.

    Returns a single (tq, D) f32 value so the caller issues ONE accumulator
    read-modify-write per k-step (v5e has a single vector-store slot).
    """
    H = m2_ref.shape[0]
    upd = [jnp.dot(m2_ref[h], h1_blk[:, h * d:(h + 1) * d],
                   preferred_element_type=jnp.float32) for h in range(H)]
    return upd[0] if H == 1 else jnp.concatenate(upd, axis=-1)


def _tri_mix_kernel(q_tbl_ref, k_tbl_ref, h1_ref, m2_ref, wout_ref, o_ref, t_ref):
    # Flattened lower-triangular grid: grid = (B, n_pairs); the scalar-prefetch
    # tables map pair index p -> (q-block, k-block).
    # h1_ref : (1, tk, D)   projected keys block, compute dtype
    # m2_ref : (H, tq, tk)  causally-masked (tril) mixing block
    # wout_ref: (D, D)      w_out reshaped head-major
    # o_ref  : (1, tq, D)   output block for (batch, q-block)
    # t_ref  : (tq, D) f32  accumulator; columns h*d:(h+1)*d hold head h
    H, tq, tk = m2_ref.shape
    D = o_ref.shape[2]
    d = D // H
    r = tq // tk                                  # k-blocks per q-block

    p = pl.program_id(1)
    qi = q_tbl_ref[p]
    ki = k_tbl_ref[p]

    @pl.when(ki == 0)                             # first k-block of this q-block
    def _init():
        t_ref[...] = jnp.zeros_like(t_ref)

    t_ref[...] += _mix_heads(m2_ref, h1_ref[0], d)

    @pl.when(ki == (qi + 1) * r - 1)              # last k-block of this q-block
    def _finalize():
        # Fused head-sum: sum_h T_h @ w_out[h] == concat_h(T_h) @ vstack(w_out)
        # -> one lane-dense (tq, D) x (D, D) MXU matmul.
        o_ref[0] = jnp.dot(t_ref[...].astype(wout_ref.dtype), wout_ref[...],
                           preferred_element_type=jnp.float32).astype(o_ref.dtype)


def _fused_kernel(x_ref, w1t_ref, m2_ref, wout_ref, o_ref, t_ref):
    # Whole sequence fits one query block (nq == 1): project + mix + output
    # projection in a single kernel, no (B, L, D) intermediate in HBM.
    d = o_ref.shape[2] // m2_ref.shape[0]
    k = pl.program_id(1)

    @pl.when(k == 0)
    def _init():
        t_ref[...] = jnp.zeros_like(t_ref)

    h1 = jnp.dot(x_ref[0], w1t_ref[...],
                 preferred_element_type=jnp.float32).astype(m2_ref.dtype)
    t_ref[...] += _mix_heads(m2_ref, h1, d)

    @pl.when(k == pl.num_programs(1) - 1)
    def _finalize():
        o_ref[0] = jnp.dot(t_ref[...].astype(wout_ref.dtype), wout_ref[...],
                           preferred_element_type=jnp.float32).astype(o_ref.dtype)


# --------------------------------------------------------------------------
# wrapper
# --------------------------------------------------------------------------

def _pick_tile(n, cap, quantum):
    """Largest tile <= cap that divides n and is a multiple of `quantum`
    (falls back to the full extent n)."""
    if n <= cap:
        return n
    t = (cap // quantum) * quantum
    while t >= quantum:
        if n % t == 0:
            return t
        t -= quantum
    return n


def _resident_weight_spec(D, index_map):
    """BlockSpec for a grid-invariant (D, D) weight: single-buffered when the
    installed jax supports pipeline_mode (default double-buffering wastes
    D*D*itemsize of VMEM on data that never changes)."""
    try:
        return pl.BlockSpec((D, D), index_map, pipeline_mode=pl.Buffered(1))
    except Exception:   # older jax: fall back to default double-buffering
        return pl.BlockSpec((D, D), index_map)


def _vmem_estimate(tq, tk, D, H, csz, osz, fused):
    """Rough per-call VMEM footprint (bytes) used to keep tiles inside v7x's
    64 MiB physical VMEM."""
    w = 2 * D * D * csz if fused else D * D * csz        # single-buffered weights
    return (2 * tk * D * csz                             # x / h1 key blocks (x2 bufs)
            + 2 * H * tq * tk * csz                      # mat2 blocks       (x2 bufs)
            + 2 * tq * D * osz                           # output block      (x2 bufs)
            + tq * D * 4                                 # f32 accumulator
            + w)


def causal_kron_block(x, w1, mat2, w_out, *, tq=None, tk=None,
                      compute_dtype=jnp.bfloat16):
    """x: (B, L, D); w1: (D, D) [nn.Linear weight]; mat2: (H, max_len, max_len);
    w_out: (H, D//H, D).  Returns (B, L, D) in x.dtype.

    compute_dtype sets the precision of the streamed operands / MXU inputs
    (default bf16: halves HBM traffic and roughly doubles MXU throughput on all
    TPU generations); accumulation is always f32."""
    B, L, D = x.shape
    H, d, D_out = w_out.shape
    assert D_out == D and H * d == D
    assert L <= mat2.shape[1]

    cdt = jnp.dtype(compute_dtype) if compute_dtype is not None else x.dtype
    out_dtype = x.dtype
    csz = jnp.dtype(cdt).itemsize
    osz = jnp.dtype(out_dtype).itemsize

    # ---- tile selection (tq > tk halves h1 re-reads across query blocks) ----
    auto = tq is None and tk is None
    if tq is None:
        tq = _pick_tile(L, 512, 8)
    if tk is None:
        tk = _pick_tile(tq, 256, 128)
    if auto:
        # Re-derive against the VMEM budget (v7x has only 64 MiB / TC):
        # drop tq before tk (review guidance).
        while (_vmem_estimate(tq, tk, D, H, csz, osz, tq == L) > _VMEM_BUDGET
               and tq > tk and (tq // 2) % tk == 0 and L % (tq // 2) == 0):
            tq //= 2
        while (_vmem_estimate(tq, tk, D, H, csz, osz, tq == L) > _VMEM_BUDGET
               and tk > 128 and (tk // 2) % 128 == 0 and tq % (tk // 2) == 0):
            tk //= 2
    assert L % tq == 0 and tq % tk == 0, "need L % tq == 0 and tq % tk == 0"
    assert tq % 8 == 0 or tq == L
    assert tk % 128 == 0 or tk == L, "tk must be a multiple of 128 (or full seq)"

    nq, nk = L // tq, L // tk
    r = tq // tk

    # ---- host-side, batch-invariant glue (done once) ----
    mat2_l = jnp.tril(mat2[:, :L, :L]).astype(cdt)       # (H, L, L) causal mask
    w1t = w1.T.astype(cdt)                               # (D, D) Linear transpose
    wout_flat = w_out.reshape(D, D).astype(cdt)          # (H*d, D), head-major rows
    xc = x.astype(cdt)

    # -------- short-sequence path: fully fused, no HBM intermediate ----------
    if nq == 1:
        cost = pl.CostEstimate(
            flops=4 * B * L * D * D + 2 * B * L * L * D,
            transcendentals=0,
            bytes_accessed=(B * L * D + B * H * L * L + 2 * D * D) * csz
                           + B * L * D * osz)
        return pl.pallas_call(
            _fused_kernel,
            out_shape=jax.ShapeDtypeStruct((B, L, D), out_dtype),
            grid=(B, nk),
            in_specs=[
                pl.BlockSpec((1, tk, D), lambda b, k: (b, k, 0)),
                _resident_weight_spec(D, lambda b, k: (0, 0)),
                pl.BlockSpec((H, tq, tk), lambda b, k: (0, 0, k)),
                _resident_weight_spec(D, lambda b, k: (0, 0)),
            ],
            out_specs=pl.BlockSpec((1, tq, D), lambda b, k: (b, 0, 0)),
            scratch_shapes=[pltpu.VMEM((tq, D), jnp.float32)],
            compiler_params=pltpu.CompilerParams(
                dimension_semantics=("parallel", "arbitrary"),
                vmem_limit_bytes=_VMEM_LIMIT),
            cost_estimate=cost,
        )(xc, w1t, mat2_l, wout_flat)

    # -------- long-sequence path ---------------------------------------------
    # Kernel A: h1 = x @ W1.T, computed once, emitted in the compute dtype.
    h1 = pl.pallas_call(
        _proj_kernel,
        out_shape=jax.ShapeDtypeStruct((B, L, D), cdt),
        grid=(B, nk),
        in_specs=[
            pl.BlockSpec((1, tk, D), lambda b, i: (b, i, 0)),
            _resident_weight_spec(D, lambda b, i: (0, 0)),
        ],
        out_specs=pl.BlockSpec((1, tk, D), lambda b, i: (b, i, 0)),
        compiler_params=pltpu.CompilerParams(
            dimension_semantics=("parallel", "parallel"),
            vmem_limit_bytes=_VMEM_LIMIT),
        cost_estimate=pl.CostEstimate(
            flops=2 * B * L * D * D,
            transcendentals=0,
            bytes_accessed=2 * B * L * D * csz + D * D * csz),
    )(xc, w1t)

    # Kernel B: causal mixing + fused head-output projection on a flattened
    # lower-triangular grid.  (q, k) block-index tables are scalar-prefetched
    # into SMEM and drive every index_map, so strictly-upper-triangular blocks
    # never become grid steps.
    pairs = [(q, k) for q in range(nq) for k in range((q + 1) * r)]
    n_pairs = len(pairs)
    q_tbl = jnp.asarray([p[0] for p in pairs], dtype=jnp.int32)
    k_tbl = jnp.asarray([p[1] for p in pairs], dtype=jnp.int32)

    cost_b = pl.CostEstimate(
        flops=2 * B * n_pairs * tq * tk * D + 2 * B * nq * tq * D * D,
        transcendentals=0,
        bytes_accessed=(B * n_pairs * (tk * D + H * tq * tk) + D * D) * csz
                       + B * L * D * osz)

    grid_spec = pltpu.PrefetchScalarGridSpec(
        num_scalar_prefetch=2,
        grid=(B, n_pairs),
        in_specs=[
            pl.BlockSpec((1, tk, D), lambda b, p, qt, kt: (b, kt[p], 0)),
            pl.BlockSpec((H, tq, tk), lambda b, p, qt, kt: (0, qt[p], kt[p])),
            _resident_weight_spec(D, lambda b, p, qt, kt: (0, 0)),
        ],
        out_specs=pl.BlockSpec((1, tq, D), lambda b, p, qt, kt: (b, qt[p], 0)),
        scratch_shapes=[pltpu.VMEM((tq, D), jnp.float32)],
    )

    return pl.pallas_call(
        _tri_mix_kernel,
        out_shape=jax.ShapeDtypeStruct((B, L, D), out_dtype),
        grid_spec=grid_spec,
        compiler_params=pltpu.CompilerParams(
            # B leads as the "parallel" axis: on v7x megacore, whole batches are
            # split across the two TensorCores (balanced, unlike a contiguous
            # q-split of triangular work).
            dimension_semantics=("parallel", "arbitrary"),
            vmem_limit_bytes=_VMEM_LIMIT),
        cost_estimate=cost_b,
    )(q_tbl, k_tbl, h1, mat2_l, wout_flat)


# --------------------------------------------------------------------------
# reference + tests
# --------------------------------------------------------------------------

def ref_forward(x, w1, mat2, w_out, compute_dtype=None):
    """Pure-JAX reference mirroring the PyTorch forward; optionally applies the
    same reduced-precision operand casts as the kernel (f32 accumulation)."""
    B, L, D = x.shape
    H, d, _ = w_out.shape
    cdt = x.dtype if compute_dtype is None else jnp.dtype(compute_dtype)
    f32 = jnp.float32
    h1 = jnp.dot(x.astype(cdt), w1.T.astype(cdt),
                 preferred_element_type=f32).astype(cdt)
    h1 = h1.reshape(B, L, H, d).transpose(0, 2, 1, 3)            # b h l d
    m = jnp.tril(mat2[:, :L, :L]).astype(cdt)
    t = jnp.einsum('hlk,bhkd->bhld', m, h1, preferred_element_type=f32)
    t = t.transpose(0, 2, 1, 3).reshape(B, L, D).astype(cdt)
    out = jnp.dot(t, w_out.reshape(D, D).astype(cdt), preferred_element_type=f32)
    return out.astype(x.dtype)


def _make_params(key, D, H, max_len):
    k1, k2, k3 = jax.random.split(key, 3)
    d = D // H
    w1 = jax.random.normal(k1, (D, D), jnp.float32) * (1.0 / D)
    inv_k = 1.0 / jnp.arange(1, max_len + 1, dtype=jnp.float32)
    scale = (jnp.ones((max_len, max_len), jnp.float32) * inv_k).T
    mat2 = jax.random.normal(k2, (H, max_len, max_len), jnp.float32) * scale
    w_out = jax.random.normal(k3, (H, d, D), jnp.float32) * (1.0 / D)
    return w1, mat2, w_out


def _check(name, out, ref, rel_tol):
    err = float(jnp.max(jnp.abs(out.astype(jnp.float32) - ref.astype(jnp.float32))))
    scale = float(jnp.max(jnp.abs(ref))) + 1e-8
    assert err <= rel_tol * scale, f"{name}: max abs err {err:.3e} vs scale {scale:.3e}"


if __name__ == "__main__":
    keys = jax.random.split(jax.random.PRNGKey(0), 6)

    # --- small shapes (B=2, L=8, D=32, H=4): single-block fused path ---
    B, L, D, H, max_len = 2, 8, 32, 4, 8
    x = jax.random.normal(keys[0], (B, L, D), jnp.float32)
    w1, mat2, w_out = _make_params(keys[1], D, H, max_len)
    out = jax.block_until_ready(
        causal_kron_block(x, w1, mat2, w_out, compute_dtype=jnp.float32))
    assert out.shape == (B, L, D)
    _check("small_f32", out, ref_forward(x, w1, mat2, w_out), 5e-3)

    # default (bf16 streams, f32 accumulation) vs. bf16-mirrored reference
    out_bf16 = jax.block_until_ready(causal_kron_block(x, w1, mat2, w_out))
    _check("small_bf16", out_bf16,
           ref_forward(x, w1, mat2, w_out, compute_dtype=jnp.bfloat16), 5e-3)

    # --- tiled triangular-grid path (nq=2, nk=2) ---
    B2, L2, D2, H2, max_len2 = 2, 256, 256, 2, 256
    x2 = jax.random.normal(keys[2], (B2, L2, D2), jnp.float32)
    w1_2, mat2_2, w_out_2 = _make_params(keys[3], D2, H2, max_len2)
    out2 = jax.block_until_ready(
        causal_kron_block(x2, w1_2, mat2_2, w_out_2, tq=128, tk=128,
                          compute_dtype=jnp.float32))
    _check("tri_f32", out2, ref_forward(x2, w1_2, mat2_2, w_out_2), 5e-3)

    out2_bf16 = jax.block_until_ready(
        causal_kron_block(x2, w1_2, mat2_2, w_out_2, tq=128, tk=128))
    _check("tri_bf16", out2_bf16,
           ref_forward(x2, w1_2, mat2_2, w_out_2, compute_dtype=jnp.bfloat16), 1e-2)

    # default tiles for L=256 -> fused single-block path, bf16 default
    out2_def = jax.block_until_ready(causal_kron_block(x2, w1_2, mat2_2, w_out_2))
    _check("fused_default_bf16", out2_def,
           ref_forward(x2, w1_2, mat2_2, w_out_2, compute_dtype=jnp.bfloat16), 1e-2)

    # --- asymmetric tiles (tq=256 > tk=128): nq=2, nk=4, 6 triangular steps ---
    B3, L3, D3, H3, max_len3 = 2, 512, 256, 2, 512
    x3 = jax.random.normal(keys[4], (B3, L3, D3), jnp.float32)
    w1_3, mat2_3, w_out_3 = _make_params(keys[5], D3, H3, max_len3)
    out3 = jax.block_until_ready(
        causal_kron_block(x3, w1_3, mat2_3, w_out_3, tq=256, tk=128,
                          compute_dtype=jnp.float32))
    _check("tri_asym_f32", out3, ref_forward(x3, w1_3, mat2_3, w_out_3), 5e-3)

    print("KERNEL_OK")
</pallas_src>

<mosaic_0001>
module attributes {stable_mosaic.version = 11 : i64} {
  func.func @_fused_kernel(%arg0: i32, %arg1: i32, %arg2: memref<1x8x32xf32, #tpu.memory_space<vmem>>, %arg3: memref<32x32xf32, #tpu.memory_space<vmem>>, %arg4: memref<4x8x8xf32, #tpu.memory_space<vmem>>, %arg5: memref<32x32xf32, #tpu.memory_space<vmem>>, %arg6: memref<1x8x32xf32, #tpu.memory_space<vmem>>, %arg7: memref<8x32xf32, #tpu.memory_space<vmem>>) attributes {dimension_semantics = [#tpu.dimension_semantics<parallel>, #tpu.dimension_semantics<arbitrary>], iteration_bounds = array<i64: 2, 1>, scalar_prefetch = 0 : i64, scratch_operands = 1 : i64, tpu.core_type = #tpu.core_type<tc>, window_params = [{transform_indices = @transform_0, window_bounds = array<i64: 1, 8, 32>}, {pipeline_mode = #tpu.pipeline_mode<synchronous>, transform_indices = @transform_1, window_bounds = array<i64: 32, 32>}, {transform_indices = @transform_2, window_bounds = array<i64: 4, 8, 8>}, {pipeline_mode = #tpu.pipeline_mode<synchronous>, transform_indices = @transform_3, window_bounds = array<i64: 32, 32>}, {transform_indices = @transform_4, window_bounds = array<i64: 1, 8, 32>}]} {
    %c0_i32 = arith.constant 0 : i32
    %0 = arith.cmpi eq, %arg1, %c0_i32 : i32
    %1 = arith.extui %0 : i1 to i32
    %c0_i32_0 = arith.constant 0 : i32
    %2 = arith.cmpi ne, %1, %c0_i32_0 : i32
    scf.if %2 {
      %cst_24 = arith.constant 0.000000e+00 : f32
      %30 = vector.broadcast %cst_24 : f32 to vector<8x32xf32>
      %c0_25 = arith.constant 0 : index
      %c0_26 = arith.constant 0 : index
      %31 = vector.load %arg7[%c0_25, %c0_26] : memref<8x32xf32, #tpu.memory_space<vmem>>, vector<8x32xf32>
      tpu.vector_store %arg7[%c0_25, %c0_26], %30 {strides = array<i32>} : memref<8x32xf32, #tpu.memory_space<vmem>>, vector<8x32xf32>,
    } else {
    }
    %c0 = arith.constant 0 : index
    %c0_1 = arith.constant 0 : index
    %c0_2 = arith.constant 0 : index
    %3 = vector.load %arg2[%c0, %c0_1, %c0_2] : memref<1x8x32xf32, #tpu.memory_space<vmem>>, vector<1x8x32xf32>
    %4 = vector.shape_cast %3 : vector<1x8x32xf32> to vector<8x32xf32>
    %c0_3 = arith.constant 0 : index
    %c0_4 = arith.constant 0 : index
    %5 = vector.load %arg3[%c0_3, %c0_4] : memref<32x32xf32, #tpu.memory_space<vmem>>, vector<32x32xf32>
    %cst = arith.constant dense<0.000000e+00> : vector<8x32xf32>
    %6 = tpu.matmul %4, %5, %cst {dimension_numbers = #tpu.dot_dimension_numbers<[1], [0], [0], [1], [0, 0, 1, 1], [], []>} : vector<8x32xf32>, vector<32x32xf32>, vector<8x32xf32> -> vector<8x32xf32>
    %c0_5 = arith.constant 0 : index
    %c0_6 = arith.constant 0 : index
    %7 = vector.load %arg7[%c0_5, %c0_6] : memref<8x32xf32, #tpu.memory_space<vmem>>, vector<8x32xf32>
    %c0_7 = arith.constant 0 : index
    %c0_8 = arith.constant 0 : index
    %c0_9 = arith.constant 0 : index
    %8 = vector.load %arg4[%c0_7, %c0_8, %c0_9] : memref<4x8x8xf32, #tpu.memory_space<vmem>>, vector<1x8x8xf32>
    %9 = vector.shape_cast %8 : vector<1x8x8xf32> to vector<8x8xf32>
    %10 = vector.extract_strided_slice %6 {offsets = [0, 0], sizes = [8, 8], strides = [1, 1]} : vector<8x32xf32> to vector<8x8xf32>
    %cst_10 = arith.constant dense<0.000000e+00> : vector<8x8xf32>
    %11 = tpu.matmul %9, %10, %cst_10 {dimension_numbers = #tpu.dot_dimension_numbers<[1], [0], [0], [1], [0, 0, 1, 1], [], []>} : vector<8x8xf32>, vector<8x8xf32>, vector<8x8xf32> -> vector<8x8xf32>
    %c1 = arith.constant 1 : index
    %c0_11 = arith.constant 0 : index
    %c0_12 = arith.constant 0 : index
    %12 = vector.load %arg4[%c1, %c0_11, %c0_12] : memref<4x8x8xf32, #tpu.memory_space<vmem>>, vector<1x8x8xf32>
    %13 = vector.shape_cast %12 : vector<1x8x8xf32> to vector<8x8xf32>
    %14 = vector.extract_strided_slice %6 {offsets = [0, 8], sizes = [8, 8], strides = [1, 1]} : vector<8x32xf32> to vector<8x8xf32>
    %cst_13 = arith.constant dense<0.000000e+00> : vector<8x8xf32>
    %15 = tpu.matmul %13, %14, %cst_13 {dimension_numbers = #tpu.dot_dimension_numbers<[1], [0], [0], [1], [0, 0, 1, 1], [], []>} : vector<8x8xf32>, vector<8x8xf32>, vector<8x8xf32> -> vector<8x8xf32>
    %c2 = arith.constant 2 : index
    %c0_14 = arith.constant 0 : index
    %c0_15 = arith.constant 0 : index
    %16 = vector.load %arg4[%c2, %c0_14, %c0_15] : memref<4x8x8xf32, #tpu.memory_space<vmem>>, vector<1x8x8xf32>
    %17 = vector.shape_cast %16 : vector<1x8x8xf32> to vector<8x8xf32>
    %18 = vector.extract_strided_slice %6 {offsets = [0, 16], sizes = [8, 8], strides = [1, 1]} : vector<8x32xf32> to vector<8x8xf32>
    %cst_16 = arith.constant dense<0.000000e+00> : vector<8x8xf32>
    %19 = tpu.matmul %17, %18, %cst_16 {dimension_numbers = #tpu.dot_dimension_numbers<[1], [0], [0], [1], [0, 0, 1, 1], [], []>} : vector<8x8xf32>, vector<8x8xf32>, vector<8x8xf32> -> vector<8x8xf32>
    %c3 = arith.constant 3 : index
    %c0_17 = arith.constant 0 : index
    %c0_18 = arith.constant 0 : index
    %20 = vector.load %arg4[%c3, %c0_17, %c0_18] : memref<4x8x8xf32, #tpu.memory_space<vmem>>, vector<1x8x8xf32>
    %21 = vector.shape_cast %20 : vector<1x8x8xf32> to vector<8x8xf32>
    %22 = vector.extract_strided_slice %6 {offsets = [0, 24], sizes = [8, 8], strides = [1, 1]} : vector<8x32xf32> to vector<8x8xf32>
    %cst_19 = arith.constant dense<0.000000e+00> : vector<8x8xf32>
    %23 = tpu.matmul %21, %22, %cst_19 {dimension_numbers = #tpu.dot_dimension_numbers<[1], [0], [0], [1], [0, 0, 1, 1], [], []>} : vector<8x8xf32>, vector<8x8xf32>, vector<8x8xf32> -> vector<8x8xf32>
    %24 = tpu.concatenate %11, %15, %19, %23 in 1 : vector<8x8xf32>, vector<8x8xf32>, vector<8x8xf32>, vector<8x8xf32> -> vector<8x32xf32>
    %25 = arith.addf %7, %24 : vector<8x32xf32>
    %c0_20 = arith.constant 0 : index
    %c0_21 = arith.constant 0 : index
    %26 = vector.load %arg7[%c0_20, %c0_21] : memref<8x32xf32, #tpu.memory_space<vmem>>, vector<8x32xf32>
    tpu.vector_store %arg7[%c0_20, %c0_21], %25 {strides = array<i32>} : memref<8x32xf32, #tpu.memory_space<vmem>>, vector<8x32xf32>,
    %c0_i32_22 = arith.constant 0 : i32
    %27 = arith.cmpi eq, %arg1, %c0_i32_22 : i32
    %28 = arith.extui %27 : i1 to i32
    %c0_i32_23 = arith.constant 0 : i32
    %29 = arith.cmpi ne, %28, %c0_i32_23 : i32
    scf.if %29 {
      %c0_24 = arith.constant 0 : index
      %c0_25 = arith.constant 0 : index
      %30 = vector.load %arg7[%c0_24, %c0_25] : memref<8x32xf32, #tpu.memory_space<vmem>>, vector<8x32xf32>
      %c0_26 = arith.constant 0 : index
      %c0_27 = arith.constant 0 : index
      %31 = vector.load %arg5[%c0_26, %c0_27] : memref<32x32xf32, #tpu.memory_space<vmem>>, vector<32x32xf32>
      %cst_28 = arith.constant dense<0.000000e+00> : vector<8x32xf32>
      %32 = tpu.matmul %30, %31, %cst_28 {dimension_numbers = #tpu.dot_dimension_numbers<[1], [0], [0], [1], [0, 0, 1, 1], [], []>} : vector<8x32xf32>, vector<32x32xf32>, vector<8x32xf32> -> vector<8x32xf32>
      %c0_29 = arith.constant 0 : index
      %c0_30 = arith.constant 0 : index
      %c0_31 = arith.constant 0 : index
      %33 = vector.load %arg6[%c0_29, %c0_30, %c0_31] : memref<1x8x32xf32, #tpu.memory_space<vmem>>, vector<1x8x32xf32>
      %34 = vector.shape_cast %33 : vector<1x8x32xf32> to vector<8x32xf32>
      %35 = vector.shape_cast %32 : vector<8x32xf32> to vector<1x8x32xf32>
      tpu.vector_store %arg6[%c0_29, %c0_30, %c0_31], %35 {strides = array<i32>} : memref<1x8x32xf32, #tpu.memory_space<vmem>>, vector<1x8x32xf32>,
    } else {
    }
    return
  }
  func.func @transform_0(%arg0: i32, %arg1: i32) -> (i32, i32, i32) {
    %c0_i32 = arith.constant 0 : i32
    %c0_i32_0 = arith.constant 0 : i32
    return %arg0, %arg1, %c0_i32 : i32, i32, i32
  }
  func.func @transform_1(%arg0: i32, %arg1: i32) -> (i32, i32) {
    %c0_i32 = arith.constant 0 : i32
    %c0_i32_0 = arith.constant 0 : i32
    %c0_i32_1 = arith.constant 0 : i32
    return %c0_i32, %c0_i32_0 : i32, i32
  }
  func.func @transform_2(%arg0: i32, %arg1: i32) -> (i32, i32, i32) {
    %c0_i32 = arith.constant 0 : i32
    %c0_i32_0 = arith.constant 0 : i32
    %c0_i32_1 = arith.constant 0 : i32
    return %c0_i32, %c0_i32_0, %arg1 : i32, i32, i32
  }
  func.func @transform_3(%arg0: i32, %arg1: i32) -> (i32, i32) {
    %c0_i32 = arith.constant 0 : i32
    %c0_i32_0 = arith.constant 0 : i32
    %c0_i32_1 = arith.constant 0 : i32
    return %c0_i32, %c0_i32_0 : i32, i32
  }
  func.func @transform_4(%arg0: i32, %arg1: i32) -> (i32, i32, i32) {
    %c0_i32 = arith.constant 0 : i32
    %c0_i32_0 = arith.constant 0 : i32
    %c0_i32_1 = arith.constant 0 : i32
    return %arg0, %c0_i32, %c0_i32_0 : i32, i32, i32
  }
}

</mosaic_0001>

<llo_original>
// kernel: tpu_custom_call.1
$region0: #{tpu_custom_call.1}
  #allocation0 [shape = 'u32[]', space=smem, size = 0x4, offset = 0x4, fixed_abs, tag = 'smem constant byte address 0x4 - core index']
  #allocation1 [shape = 'u32[72,128]{1,0:T(1,128)}', space=vmem, size = 0x9000, scoped, tag = 'internal scratch']
  #allocation2 [shape = 'f32[8,32]{1,0:T(8,128)}', space=vmem, size = 0x1000, scoped, tag = 'scratch operand']
  %s0 = inlined_call_operand.hbm [shape: f32[2,8,32], index: 0, kind: input, shape index: {}]
  %s1 = inlined_call_operand.hbm [shape: f32[32,32], index: 1, kind: input, shape index: {}]
  %s2 = inlined_call_operand.hbm [shape: f32[4,8,8], index: 2, kind: input, shape index: {}]
  %s3 = inlined_call_operand.hbm [shape: f32[32,32], index: 3, kind: input, shape index: {}]
  %s4 = inlined_call_operand.hbm [shape: f32[2,8,32], index: 4, kind: output, shape index: {}]
  %s5 = sld [smem:[#allocation0]]
  $region73: #{tpu_custom_call.1} parent=0
    _
  %s7 = ssub.s32 1, %s5
  %s8 = scalar_select 0, %s7, %s5
  $region1: #{tpu_custom_call.1} parent=0
    #allocation3 [shape = 'u8[8192]{0}', space=vmem, size = 0x2000, scoped, tag = 'input window, operand 0']
    #allocation4 [shape = 's32[2]{0}', space=sflag, size = 0x8, scoped, tag = 'scoped memory for tpu_custom_call.1']
    #allocation5 [shape = 's32[2]{0}', space=sflag, size = 0x8, scoped, tag = 'scoped memory for tpu_custom_call.1']
    #allocation6 [shape = 'u8[16384]{0}', space=vmem, size = 0x4000, scoped, tag = 'input window, operand 1, single buffered']
    #allocation7 [shape = 's32[1]{0}', space=sflag, size = 0x4, scoped, tag = 'scoped memory for tpu_custom_call.1']
    #allocation8 [shape = 'u8[16384]{0}', space=vmem, size = 0x4000, scoped, tag = 'input window, operand 2, single buffered']
    #allocation9 [shape = 'u8[16384]{0}', space=vmem, size = 0x4000, scoped, tag = 'input window, operand 3, single buffered']
    #allocation10 [shape = 's32[1]{0}', space=sflag, size = 0x4, scoped, tag = 'scoped memory for tpu_custom_call.1']
    #allocation11 [shape = 'u8[8192]{0}', space=vmem, size = 0x2000, scoped, tag = 'output window, operand 0']
    %9 = vsyncpa [#allocation4], 0
    %s10 = scalar_lea.sflag [#allocation4], 1
    %11 = vsyncpa %s10, 0
    %12 = vsyncpa [#allocation7], 0
    %13 = vsyncpa [#allocation10], 0
    %14 = vsyncpa [#allocation5], 0
    %s15 = scalar_lea.sflag [#allocation5], 1
    %16 = vsyncpa %s15, 0
    loop: start=0, step=1, limit=4
    $region2: #{tpu_custom_call.1} parent=1 // loop_pre_header
      _
    $region3: #{tpu_custom_call.1} parent=1 // loop_header
      %s18 = sphi 0, %s22
      %p19 = scmp.ge.s32.totalorder %s18, 4
      %s25 = sphi 0, %s37
      %s26 = sphi 0, %s33
      %s27 = sphi 0, %s25
      %s28 = sphi 0, %s26
      %s29 = sphi 0, %s27
      %s30 = sphi 0, %s28
      %s42 = sphi 0, %s44
      %s45 = sphi 0, %s42
      %s46 = sphi 0, %s45
      %s62 = sphi 0, %s46
      %s66 = sphi 0, %s66
      %s68 = sphi 0, %s66
      %s69 = sphi 0, %s68
      %s83 = sphi 0, %s69
      %s89 = sphi 0, %s91
      %s92 = sphi 0, %s89
      %s93 = sphi 0, %s92
      %s109 = sphi 0, %s93
      %s113 = sphi 0, %s113
      %s115 = sphi 0, %s113
      %s116 = sphi 0, %s115
      %s130 = sphi 0, %s116
      %s136 = sphi 0, %s138
      %s139 = sphi 0, %s136
      %s140 = sphi 0, %s139
      %s156 = sphi 0, %s140
    $region4: #{tpu_custom_call.1} parent=1 // loop_header_branch
      %21 = sbr.rel (%p19) target = $region8
    $region5: #{tpu_custom_call.1} parent=1 // loop_body
      %s23 = ssub.s32 %s18, 1
      %s24 = ssub.s32 %s18, 2
      %s31 = sadd.s32 1, %s26
      %p32 = scmp.ge.s32.totalorder %s31, 1
      %s33 = scalar_select %p32, 0, %s31
      %s34 = sadd.s32 1, %s25
      %s35 = scalar_select %p32, %s34, %s25
      %p36 = scmp.ge.s32.totalorder %s35, 2
      %s37 = scalar_select %p36, 0, %s35
      %s38 = ssub.s32 %s25, %s37
      %s39 = ssub.s32 %s26, %s33
      %s40 = sor.u32 %s38, %s39
      %p41 = scmp.eq.s32.totalorder %s40, 0
      %s43 = sadd.s32 %s42, 1
      %s44 = scalar_select %p41, %s42, %s43
      %p47 = pneg %p41
      %p48 = scmp.eq.s32.totalorder %s18, 1
      %p49 = por %p47, %p48
      %p50 = scmp.ne.s32.totalorder %s42, %s45
      %p51 = scmp.eq.s32.totalorder %s18, 0
      %p52 = por %p50, %p51
      %p53 = scmp.ne.s32.totalorder %s42, %s45
      %p54 = scmp.eq.s32.totalorder %s23, 1
      %p55 = por %p53, %p54
      %p56 = scmp.ne.s32.totalorder %s45, %s46
      %p57 = scmp.eq.s32.totalorder %s23, 0
      %p58 = por %p56, %p57
      %p59 = scmp.ne.s32.totalorder %s45, %s46
      %p60 = scmp.eq.s32.totalorder %s24, 1
      %p61 = por %p59, %p60
      %p63 = scmp.ne.s32.totalorder %s46, %s62
      %p64 = scmp.eq.s32.totalorder %s24, 0
      %p65 = por %p63, %p64
      %s67 = sadd.s32 %s66, 1
      %p70 = scmp.eq.s32.totalorder %s18, 1
      %p71 = scmp.ne.s32.totalorder %s66, %s68
      %p72 = scmp.eq.s32.totalorder %s18, 0
      %p73 = por %p71, %p72
      %p74 = scmp.ne.s32.totalorder %s66, %s68
      %p75 = scmp.eq.s32.totalorder %s23, 1
      %p76 = por %p74, %p75
      %p77 = scmp.ne.s32.totalorder %s68, %s69
      %p78 = scmp.eq.s32.totalorder %s23, 0
      %p79 = por %p77, %p78
      %p80 = scmp.ne.s32.totalorder %s68, %s69
      %p81 = scmp.eq.s32.totalorder %s24, 1
      %p82 = por %p80, %p81
      %p84 = scmp.ne.s32.totalorder %s69, %s83
      %p85 = scmp.eq.s32.totalorder %s24, 0
      %p86 = por %p84, %p85
      %s87 = ssub.s32 %s26, %s33
      %p88 = scmp.eq.s32.totalorder %s87, 0
      %s90 = sadd.s32 %s89, 1
      %s91 = scalar_select %p88, %s89, %s90
      %p94 = pneg %p88
      %p95 = scmp.eq.s32.totalorder %s18, 1
      %p96 = por %p94, %p95
      %p97 = scmp.ne.s32.totalorder %s89, %s92
      %p98 = scmp.eq.s32.totalorder %s18, 0
      %p99 = por %p97, %p98
      %p100 = scmp.ne.s32.totalorder %s89, %s92
      %p101 = scmp.eq.s32.totalorder %s23, 1
      %p102 = por %p100, %p101
      %p103 = scmp.ne.s32.totalorder %s92, %s93
      %p104 = scmp.eq.s32.totalorder %s23, 0
      %p105 = por %p103, %p104
      %p106 = scmp.ne.s32.totalorder %s92, %s93
      %p107 = scmp.eq.s32.totalorder %s24, 1
      %p108 = por %p106, %p107
      %p110 = scmp.ne.s32.totalorder %s93, %s109
      %p111 = scmp.eq.s32.totalorder %s24, 0
      %p112 = por %p110, %p111
      %s114 = sadd.s32 %s113, 1
      %p117 = scmp.eq.s32.totalorder %s18, 1
      %p118 = scmp.ne.s32.totalorder %s113, %s115
      %p119 = scmp.eq.s32.totalorder %s18, 0
      %p120 = por %p118, %p119
      %p121 = scmp.ne.s32.totalorder %s113, %s115
      %p122 = scmp.eq.s32.totalorder %s23, 1
      %p123 = por %p121, %p122
      %p124 = scmp.ne.s32.totalorder %s115, %s116
      %p125 = scmp.eq.s32.totalorder %s23, 0
      %p126 = por %p124, %p125
      %p127 = scmp.ne.s32.totalorder %s115, %s116
      %p128 = scmp.eq.s32.totalorder %s24, 1
      %p129 = por %p127, %p128
      %p131 = scmp.ne.s32.totalorder %s116, %s130
      %p132 = scmp.eq.s32.totalorder %s24, 0
      %p133 = por %p131, %p132
      %s134 = ssub.s32 %s25, %s37
      %p135 = scmp.eq.s32.totalorder %s134, 0
      %s137 = sadd.s32 %s136, 1
      %s138 = scalar_select %p135, %s136, %s137
      %p141 = pneg %p135
      %p142 = scmp.eq.s32.totalorder %s18, 1
      %p143 = por %p141, %p142
      %p144 = scmp.ne.s32.totalorder %s136, %s139
      %p145 = scmp.eq.s32.totalorder %s18, 0
      %p146 = por %p144, %p145
      %p147 = scmp.ne.s32.totalorder %s136, %s139
      %p148 = scmp.eq.s32.totalorder %s23, 1
      %p149 = por %p147, %p148
      %p150 = scmp.ne.s32.totalorder %s139, %s140
      %p151 = scmp.eq.s32.totalorder %s23, 0
      %p152 = por %p150, %p151
      %p153 = scmp.ne.s32.totalorder %s139, %s140
      %p154 = scmp.eq.s32.totalorder %s24, 1
      %p155 = por %p153, %p154
      %p157 = scmp.ne.s32.totalorder %s140, %s156
      %p158 = scmp.eq.s32.totalorder %s24, 0
      %p159 = por %p157, %p158
      %p160 = scmp.le.s32.totalorder 1, %s18
      %p161 = scmp.lt.s32.totalorder %s18, 3
      %p162 = pnand %p160, %p161
      %p163 = pneg %p162
      // Predicated region
      $region9: #{tpu_custom_call.1} parent=5 // pred_check
        _
      $region10: #{tpu_custom_call.1} parent=5 // pred_check_branch
        %165 = sbr.rel (%p162) target = $region12
      $region11: #{tpu_custom_call.1} parent=5 // pred_region
        %s166 = ssub.s32 %s18, 1
        // Predicated region
        $region13: #{tpu_custom_call.1} parent=11 // pred_check
          %p167 = pneg %p79
        $region14: #{tpu_custom_call.1} parent=11 // pred_check_branch
          %169 = sbr.rel (%p167) target = $region16
        $region15: #{tpu_custom_call.1} parent=11 // pred_region
          %171 = vsyncadd [#allocation7], 0
          %s172 = sshll.u32 %s1, 4
          %s173 = int_to_ptr.hbm [resolvable:$true] %s172
          %s174 = sshll.u32 [#allocation6], 4
          %s175 = int_to_ptr.vmem [resolvable:$true] %s174
          %180 = dma.hbm_to_vmem [thread:$0]  %s173, 512, %s175, [#allocation7], 128, 128, 8
        $region16: #{tpu_custom_call.1} parent=11 // pred_fallthru
          _
        // Predicated region
        $region17: #{tpu_custom_call.1} parent=11 // pred_check
          %p181 = pneg %p105
        $region18: #{tpu_custom_call.1} parent=11 // pred_check_branch
          %183 = sbr.rel (%p181) target = $region20
        $region19: #{tpu_custom_call.1} parent=11 // pred_region
          %185 = vsyncadd [#allocation7], 0
          %s186 = smul.addr %s28, 8
          %s187 = scalar_lea.hbm %s2, %s186
          %s188 = sshll.u32 %s187, 4
          %s189 = int_to_ptr.hbm [resolvable:$true] %s188
          %s190 = sshll.u32 [#allocation8], 4
          %s191 = int_to_ptr.vmem [resolvable:$true] %s190
          %196 = dma.hbm_to_vmem [thread:$0]  %s189, 512, %s191, [#allocation7], 128, 128, 8
        $region20: #{tpu_custom_call.1} parent=11 // pred_fallthru
          _
        // Predicated region
        $region21: #{tpu_custom_call.1} parent=11 // pred_check
          %p197 = pneg %p126
        $region22: #{tpu_custom_call.1} parent=11 // pred_check_branch
          %199 = sbr.rel (%p197) target = $region24
        $region23: #{tpu_custom_call.1} parent=11 // pred_region
          %201 = vsyncadd [#allocation10], 0
          %s202 = sshll.u32 %s3, 4
          %s203 = int_to_ptr.hbm [resolvable:$true] %s202
          %s204 = sshll.u32 [#allocation9], 4
          %s205 = int_to_ptr.vmem [resolvable:$true] %s204
          %210 = dma.hbm_to_vmem [thread:$0]  %s203, 512, %s205, [#allocation10], 128, 128, 8
        $region24: #{tpu_custom_call.1} parent=11 // pred_fallthru
          _
      $region12: #{tpu_custom_call.1} parent=5 // pred_fallthru
        _
      %p211 = scmp.lt.s32.totalorder %s18, 2
      // Predicated region
      $region25: #{tpu_custom_call.1} parent=5 // pred_check
        %p212 = pneg %p211
      $region26: #{tpu_custom_call.1} parent=5 // pred_check_branch
        %214 = sbr.rel (%p212) target = $region28
      $region27: #{tpu_custom_call.1} parent=5 // pred_region
        // Predicated region
        $region29: #{tpu_custom_call.1} parent=27 // pred_check
          %p215 = pneg %p52
        $region30: #{tpu_custom_call.1} parent=27 // pred_check_branch
          %217 = sbr.rel (%p215) target = $region32
        $region31: #{tpu_custom_call.1} parent=27 // pred_region
          %s218 = sand.u32 %s42, 1
          %s219 = scalar_lea.sflag [#allocation4], %s218
          %s220 = sand.u32 %s42, 1
          %s221 = smul.addr %s220, 8
          %s222 = scalar_lea.vmem [#allocation3], %s221
          %224 = vsyncadd %s219, 0
          %s225 = sadd.s32 %s26, %s25
          %s226 = smul.addr %s225, 8
          %s227 = scalar_lea.hbm %s0, %s226
          %s229 = sshll.u32 %s227, 4
          %s230 = int_to_ptr.hbm [resolvable:$true] %s229
          %s231 = sshll.u32 %s222, 4
          %s232 = int_to_ptr.vmem [resolvable:$true] %s231
          %234 = dma.hbm_to_vmem [thread:$0]  %s230, 128, %s232, %s219
        $region32: #{tpu_custom_call.1} parent=27 // pred_fallthru
          _
      $region28: #{tpu_custom_call.1} parent=5 // pred_fallthru
        _
      %p235 = scmp.le.s32.totalorder 1, %s18
      %p236 = scmp.lt.s32.totalorder %s18, 3
      %p237 = pnand %p235, %p236
      %p238 = pneg %p237
      // Predicated region
      $region33: #{tpu_custom_call.1} parent=5 // pred_check
        _
      $region34: #{tpu_custom_call.1} parent=5 // pred_check_branch
        %240 = sbr.rel (%p237) target = $region36
      $region35: #{tpu_custom_call.1} parent=5 // pred_region
        %s241 = ssub.s32 %s18, 1
        %s242 = sand.u32 %s45, 1
        %s243 = scalar_lea.sflag [#allocation4], %s242
        %s244 = sand.u32 %s45, 1
        %s245 = smul.addr %s244, 8
        %s246 = scalar_lea.vmem [#allocation3], %s245
        // Predicated region
        $region37: #{tpu_custom_call.1} parent=35 // pred_check
          %p247 = pneg %p58
        $region38: #{tpu_custom_call.1} parent=35 // pred_check_branch
          %249 = sbr.rel (%p247) target = $region40
        $region39: #{tpu_custom_call.1} parent=35 // pred_region
          %251 = dma.done %s243, 128
        $region40: #{tpu_custom_call.1} parent=35 // pred_fallthru
          _
        // Predicated region
        $region41: #{tpu_custom_call.1} parent=35 // pred_check
          %p252 = pneg %p79
        $region42: #{tpu_custom_call.1} parent=35 // pred_check_branch
          %254 = sbr.rel (%p252) target = $region44
        $region43: #{tpu_custom_call.1} parent=35 // pred_region
          %256 = dma.done [#allocation7], 512
        $region44: #{tpu_custom_call.1} parent=35 // pred_fallthru
          _
        // Predicated region
        $region45: #{tpu_custom_call.1} parent=35 // pred_check
          %p257 = pneg %p105
        $region46: #{tpu_custom_call.1} parent=35 // pred_check_branch
          %259 = sbr.rel (%p257) target = $region48
        $region47: #{tpu_custom_call.1} parent=35 // pred_region
          %261 = dma.done [#allocation7], 512
        $region48: #{tpu_custom_call.1} parent=35 // pred_fallthru
          _
        // Predicated region
        $region49: #{tpu_custom_call.1} parent=35 // pred_check
          %p262 = pneg %p126
        $region50: #{tpu_custom_call.1} parent=35 // pred_check_branch
          %264 = sbr.rel (%p262) target = $region52
        $region51: #{tpu_custom_call.1} parent=35 // pred_region
          %266 = dma.done [#allocation10], 512
        $region52: #{tpu_custom_call.1} parent=35 // pred_fallthru
          _
        %s267 = sand.u32 %s45, 1
        %s268 = scalar_lea.sflag [#allocation4], %s267
        %s269 = sand.u32 %s45, 1
        %s270 = smul.addr %s269, 8
        %s271 = scalar_lea.vmem [#allocation3], %s270
        %p272 = pneg %p58
        %p273 = pneg %p55
        %p274 = pneg %p79
        %p275 = pneg %p76
        %p276 = pneg %p105
        %p277 = pneg %p102
        %p278 = pneg %p126
        %p279 = pneg %p123
        %p280 = pneg %p152
        %p281 = pneg %p149
        %s282 = sand.u32 %s139, 1
        %s283 = scalar_lea.sflag [#allocation5], %s282
        %s284 = sand.u32 %s139, 1
        %s285 = smul.addr %s284, 8
        %s286 = scalar_lea.vmem [#allocation11], %s285
        %p287 = scmp.eq.s32.totalorder %s28, 0
        // Predicated region
        $region53: #{tpu_custom_call.1} parent=35 // pred_check
          %p288 = pneg %p287
        $region54: #{tpu_custom_call.1} parent=35 // pred_check_branch
          %290 = sbr.rel (%p288) target = $region56
        $region55: #{tpu_custom_call.1} parent=35 // pred_region
          %vm291 = vcmask 261120
          %292 = vst.msk [vmem:[#allocation2] sm:$0xff] %vm291, 0.0
        $region56: #{tpu_custom_call.1} parent=35 // pred_fallthru
          _
        %v293 = vld [vmem:[%s246] sm:$0xff]
        %v294 = vld [vmem:[#allocation6] sm:$0xff]
        %v295 = vld [vmem:[#allocation6 + $0x8] sm:$0xff]
        %v296 = vld [vmem:[#allocation6 + $0x10] sm:$0xff]
        %v297 = vld [vmem:[#allocation6 + $0x18] sm:$0xff]
        %vm298 = vcmask 261120
        %v300 = vsel %vm298, %v293, 0
        %302 = vmatpush.msra.mxu0 0.0
        %303 = vmatpush.msra.mxu0 0.0
        %304 = vmatpush.msra.mxu0 0.0
        %305 = vmatpush.msra.mxu0 0.0
        %306 = vmatpush.msra.mxu0 0.0
        %307 = vmatpush.msra.mxu0 0.0
        %308 = vmatpush.msra.mxu0 0.0
        %309 = vmatpush.msra.mxu0 0.0
        %310 = vmatpush.msra.mxu0 0.0
        %311 = vmatpush.msra.mxu0 0.0
        %312 = vmatpush.msra.mxu0 0.0
        %313 = vmatpush.msra.mxu0 0.0
        %314 = vmatpush.msra.mxu0 %v297
        %315 = vmatpush.msra.mxu0 %v296
        %316 = vmatpush.msra.mxu0 %v295
        %317 = vmatpush.msra.mxu0 %v294
        %318 = vmatmul.f32.gmra.mxu0 %v300
        %v319 = vpop.f32.mrf.mxu0
        %v320 = vadd.f32 0.0, %v319
        %321 = vdwg.mxu0
        %v322 = vld [vmem:[#allocation2] sm:$0xff]
        %v323 = vld [vmem:[#allocation8] sm:$0xff]
        %vm324 = vcmask 64512
        %v326 = vsel %vm324, %v323, 0
        %328 = vmatpush.msra.mxu0 0.0
        %329 = vmatpush.msra.mxu0 0.0
        %330 = vmatpush.msra.mxu0 0.0
        %331 = vmatpush.msra.mxu0 0.0
        %332 = vmatpush.msra.mxu0 0.0
        %333 = vmatpush.msra.mxu0 0.0
        %334 = vmatpush.msra.mxu0 0.0
        %335 = vmatpush.msra.mxu0 0.0
        %336 = vmatpush.msra.mxu0 0.0
        %337 = vmatpush.msra.mxu0 0.0
        %338 = vmatpush.msra.mxu0 0.0
        %339 = vmatpush.msra.mxu0 0.0
        %340 = vmatpush.msra.mxu0 0.0
        %341 = vmatpush.msra.mxu0 0.0
        %342 = vmatpush.msra.mxu0 0.0
        %343 = vmatpush.msra.mxu0 %v320
        %344 = vmatmul.f32.gmra.mxu0 %v326
        %v345 = vpop.f32.mrf.mxu0
        %v346 = vadd.f32 0.0, %v345
        %347 = vdwg.mxu0
        %s348 = scalar_lea.vmem [#allocation8], 8
        %v349 = vld [vmem:[%s348] sm:$0xff]
        %351 = vrot.lane.b32.xlu0 %v320, 120
        %v352 = vpop.permute.xlu0 %351
        %v355 = vsel %vm324, %v349, 0
        %357 = vmatpush.msra.mxu0 0.0
        %358 = vmatpush.msra.mxu0 0.0
        %359 = vmatpush.msra.mxu0 0.0
        %360 = vmatpush.msra.mxu0 0.0
        %361 = vmatpush.msra.mxu0 0.0
        %362 = vmatpush.msra.mxu0 0.0
        %363 = vmatpush.msra.mxu0 0.0
        %364 = vmatpush.msra.mxu0 0.0
        %365 = vmatpush.msra.mxu0 0.0
        %366 = vmatpush.msra.mxu0 0.0
        %367 = vmatpush.msra.mxu0 0.0
        %368 = vmatpush.msra.mxu0 0.0
        %369 = vmatpush.msra.mxu0 0.0
        %370 = vmatpush.msra.mxu0 0.0
        %371 = vmatpush.msra.mxu0 0.0
        %372 = vmatpush.msra.mxu0 %v352
        %373 = vmatmul.f32.gmra.mxu0 %v355
        %v374 = vpop.f32.mrf.mxu0
        %v375 = vadd.f32 0.0, %v374
        %376 = vdwg.mxu0
        %s377 = scalar_lea.vmem [#allocation8], 16
        %v378 = vld [vmem:[%s377] sm:$0xff]
        %379 = vrot.lane.b32.xlu0 %v320, 112
        %v380 = vpop.permute.xlu0 %379
        %v383 = vsel %vm324, %v378, 0
        %385 = vmatpush.msra.mxu0 0.0
        %386 = vmatpush.msra.mxu0 0.0
        %387 = vmatpush.msra.mxu0 0.0
        %388 = vmatpush.msra.mxu0 0.0
        %389 = vmatpush.msra.mxu0 0.0
        %390 = vmatpush.msra.mxu0 0.0
        %391 = vmatpush.msra.mxu0 0.0
        %392 = vmatpush.msra.mxu0 0.0
        %393 = vmatpush.msra.mxu0 0.0
        %394 = vmatpush.msra.mxu0 0.0
        %395 = vmatpush.msra.mxu0 0.0
        %396 = vmatpush.msra.mxu0 0.0
        %397 = vmatpush.msra.mxu0 0.0
        %398 = vmatpush.msra.mxu0 0.0
        %399 = vmatpush.msra.mxu0 0.0
        %400 = vmatpush.msra.mxu0 %v380
        %401 = vmatmul.f32.gmra.mxu0 %v383
        %v402 = vpop.f32.mrf.mxu0
        %v403 = vadd.f32 0.0, %v402
        %404 = vdwg.mxu0
        %s405 = scalar_lea.vmem [#allocation8], 24
        %v406 = vld [vmem:[%s405] sm:$0xff]
        %407 = vrot.lane.b32.xlu0 %v320, 104
        %v408 = vpop.permute.xlu0 %407
        %v411 = vsel %vm324, %v406, 0
        %413 = vmatpush.msra.mxu0 0.0
        %414 = vmatpush.msra.mxu0 0.0
        %415 = vmatpush.msra.mxu0 0.0
        %416 = vmatpush.msra.mxu0 0.0
        %417 = vmatpush.msra.mxu0 0.0
        %418 = vmatpush.msra.mxu0 0.0
        %419 = vmatpush.msra.mxu0 0.0
        %420 = vmatpush.msra.mxu0 0.0
        %421 = vmatpush.msra.mxu0 0.0
        %422 = vmatpush.msra.mxu0 0.0
        %423 = vmatpush.msra.mxu0 0.0
        %424 = vmatpush.msra.mxu0 0.0
        %425 = vmatpush.msra.mxu0 0.0
        %426 = vmatpush.msra.mxu0 0.0
        %427 = vmatpush.msra.mxu0 0.0
        %428 = vmatpush.msra.mxu0 %v408
        %429 = vmatmul.f32.gmra.mxu0 %v411
        %v430 = vpop.f32.mrf.mxu0
        %v431 = vadd.f32 0.0, %v430
        %432 = vdwg.mxu0
        %434 = vrot.lane.b32.xlu0 %v375, 8
        %v435 = vpop.permute.xlu0 %434
        %438 = vrot.lane.b32.xlu0 %v403, 16
        %v439 = vpop.permute.xlu0 %438
        %442 = vrot.lane.b32.xlu0 %v431, 24
        %v443 = vpop.permute.xlu0 %442
        %v445 = vsel %vm324, %v346, %v435
        %vm446 = vcmask 130048
        %v447 = vsel %vm446, %v445, %v439
        %vm448 = vcmask 195584
        %v449 = vsel %vm448, %v447, %v443
        %v450 = vadd.f32 %v322, %v449
        %451 = vst.msk [vmem:[#allocation2] sm:$0xff] %vm298, %v450
        // Predicated region
        $region57: #{tpu_custom_call.1} parent=35 // pred_check
          %p452 = pneg %p287
        $region58: #{tpu_custom_call.1} parent=35 // pred_check_branch
          %454 = sbr.rel (%p452) target = $region60
        $region59: #{tpu_custom_call.1} parent=35 // pred_region
          %v455 = vld [vmem:[#allocation2] sm:$0xff]
          %v456 = vld [vmem:[#allocation9] sm:$0xff]
          %v457 = vld [vmem:[#allocation9 + $0x8] sm:$0xff]
          %v458 = vld [vmem:[#allocation9 + $0x10] sm:$0xff]
          %v459 = vld [vmem:[#allocation9 + $0x18] sm:$0xff]
          %v461 = vsel %vm298, %v455, 0
          %463 = vmatpush.msra.mxu0 0.0
          %464 = vmatpush.msra.mxu0 0.0
          %465 = vmatpush.msra.mxu0 0.0
          %466 = vmatpush.msra.mxu0 0.0
          %467 = vmatpush.msra.mxu0 0.0
          %468 = vmatpush.msra.mxu0 0.0
          %469 = vmatpush.msra.mxu0 0.0
          %470 = vmatpush.msra.mxu0 0.0
          %471 = vmatpush.msra.mxu0 0.0
          %472 = vmatpush.msra.mxu0 0.0
          %473 = vmatpush.msra.mxu0 0.0
          %474 = vmatpush.msra.mxu0 0.0
          %475 = vmatpush.msra.mxu0 %v459
          %476 = vmatpush.msra.mxu0 %v458
          %477 = vmatpush.msra.mxu0 %v457
          %478 = vmatpush.msra.mxu0 %v456
          %479 = vmatmul.f32.gmra.mxu0 %v461
          %v480 = vpop.f32.mrf.mxu0
          %v481 = vadd.f32 0.0, %v480
          %482 = vdwg.mxu0
          %483 = vst.msk [vmem:[%s286] sm:$0xff] %vm298, %v481
        $region60: #{tpu_custom_call.1} parent=35 // pred_fallthru
          _
        %s484 = sand.u32 %s139, 1
        %s485 = scalar_lea.sflag [#allocation5], %s484
        %s486 = sand.u32 %s139, 1
        %s487 = smul.addr %s486, 8
        %s488 = scalar_lea.vmem [#allocation11], %s487
        // Predicated region
        $region61: #{tpu_custom_call.1} parent=35 // pred_check
          %p489 = pneg %p149
        $region62: #{tpu_custom_call.1} parent=35 // pred_check_branch
          %491 = sbr.rel (%p489) target = $region64
        $region63: #{tpu_custom_call.1} parent=35 // pred_region
          %493 = vsyncadd %s485, 0
          %s494 = smul.addr %s27, 8
          %s495 = scalar_lea.hbm %s4, %s494
          %s497 = sshll.u32 %s488, 4
          %s498 = int_to_ptr.vmem [resolvable:$true] %s497
          %s499 = sshll.u32 %s495, 4
          %s500 = int_to_ptr.hbm [resolvable:$true] %s499
          %502 = dma.vmem_to_hbm [thread:$0]  %s498, 128, %s500, %s485
        $region64: #{tpu_custom_call.1} parent=35 // pred_fallthru
          _
      $region36: #{tpu_custom_call.1} parent=5 // pred_fallthru
        _
      %p503 = scmp.le.s32.totalorder 2, %s18
      // Predicated region
      $region65: #{tpu_custom_call.1} parent=5 // pred_check
        %p504 = pneg %p503
      $region66: #{tpu_custom_call.1} parent=5 // pred_check_branch
        %506 = sbr.rel (%p504) target = $region68
      $region67: #{tpu_custom_call.1} parent=5 // pred_region
        %s507 = ssub.s32 %s18, 2
        // Predicated region
        $region69: #{tpu_custom_call.1} parent=67 // pred_check
          %p508 = pneg %p155
        $region70: #{tpu_custom_call.1} parent=67 // pred_check_branch
          %510 = sbr.rel (%p508) target = $region72
        $region71: #{tpu_custom_call.1} parent=67 // pred_region
          %s511 = sand.u32 %s140, 1
          %s512 = scalar_lea.sflag [#allocation5], %s511
          %s513 = sand.u32 %s140, 1
          %s514 = smul.addr %s513, 8
          %s515 = scalar_lea.vmem [#allocation11], %s514
          %517 = dma.done %s512, 128
        $region72: #{tpu_custom_call.1} parent=67 // pred_fallthru
          _
      $region68: #{tpu_custom_call.1} parent=5 // pred_fallthru
        _
    $region6: #{tpu_custom_call.1} parent=1 // loop_footer
      %s22 = sadd.s32 1, %s18
    $region7: #{tpu_custom_call.1} parent=1 // loop_footer_branch
      %17 = sbr.rel target = $region3
    $region8: #{tpu_custom_call.1} parent=1 // loop_exit
      _
    %518 = vsyncpa [#allocation4], 1
    %s519 = scalar_lea.sflag [#allocation4], 1
    %520 = vsyncpa %s519, 1
    %521 = vsyncpa [#allocation7], 1
    %522 = vsyncpa [#allocation10], 1
    %523 = vsyncpa [#allocation5], 1
    %s524 = scalar_lea.sflag [#allocation5], 1
    %525 = vsyncpa %s524, 1

</llo_original>
